<compile_context>
chip_gen: v6e
topology: v6e:2x2x1
jax: 0.10.0
libtpu: 0.0.40
codegen_flags: <defaults>
</compile_context>

<pallas_src>
import numpy as np
import jax
import jax.numpy as jnp
from jax.experimental import pallas as pl
from jax.experimental.pallas import tpu as pltpu


def _round_up(x, m):
    return (x + m - 1) // m * m


# ----------------------------- Pallas kernel --------------------------------
def _lm_kernel(x_ref, w_ref, b_ref, mask_ref, o_ref):
    # x_ref:    (tN, H)  bfloat16 -- embedded last-token activations (tile)
    # w_ref:    (H, V)   bfloat16 -- output projection (resident)
    # b_ref:    (1, V)   float32  -- output bias
    # mask_ref: (tN, 1)  int32    -- eos_mask[-1] (1 => sequence already ended)
    # o_ref:    (tN, V)  float32  -- masked log-probabilities (tile)
    logits = jnp.dot(x_ref[...], w_ref[...],
                     preferred_element_type=jnp.float32) + b_ref[...]
    m = jnp.max(logits, axis=-1, keepdims=True)
    e = jnp.exp(logits - m)                              # EUP
    lse = m + jnp.log(jnp.sum(e, axis=-1, keepdims=True))
    logp = logits - lse
    keep = mask_ref[...] == 0                            # (tN, 1) broadcast
    o_ref[...] = jnp.where(keep, logp, 0.0)


def _vmem_limit_bytes(tn, h, v):
    # double-buffered tiles: x(bf16) + w(bf16) + b(f32) + mask(i32) + out(f32)
    per_step = tn * h * 2 + h * v * 2 + v * 4 + tn * 4 + tn * v * 4
    need = 2 * per_step
    return int(min(64 * 1024 * 1024, max(8 * 1024 * 1024, 2 * need)))


def _last_log_probs_pallas(x, w, b, eos_last_mask, *, block_n=256):
    """x: (N,H) bf16, w: (H,V) bf16, b: (V,) f32, eos_last_mask: (N,) -> (N,V) f32."""
    n, h = x.shape
    v = w.shape[1]

    # Tile the flattened-batch axis; keep the whole vocab row per block so the
    # log-softmax reduction stays in-tile.
    # TODO(synk): for very large vocabularies (V*4B per row > VMEM budget) add a
    # second "arbitrary" grid axis over V tiles with an online-softmax scratch.
    tn = _round_up(min(block_n, _round_up(n, 8)), 8)
    n_pad = _round_up(n, tn)

    mask_i32 = eos_last_mask.astype(jnp.int32)
    if n_pad != n:
        x = jnp.pad(x, ((0, n_pad - n), (0, 0)))
        mask_i32 = jnp.pad(mask_i32, (0, n_pad - n), constant_values=1)
    mask2d = mask_i32.reshape(n_pad, 1)
    b2d = b.astype(jnp.float32).reshape(1, v)

    grid = (n_pad // tn,)
    out = pl.pallas_call(
        _lm_kernel,
        out_shape=jax.ShapeDtypeStruct((n_pad, v), jnp.float32),
        grid_spec=pltpu.PrefetchScalarGridSpec(
            num_scalar_prefetch=0,
            grid=grid,
            in_specs=[
                pl.BlockSpec((tn, h), lambda i: (i, 0)),   # x tile
                pl.BlockSpec((h, v), lambda i: (0, 0)),    # weight (resident)
                pl.BlockSpec((1, v), lambda i: (0, 0)),    # bias
                pl.BlockSpec((tn, 1), lambda i: (i, 0)),   # eos mask tile
            ],
            out_specs=pl.BlockSpec((tn, v), lambda i: (i, 0)),
        ),
        compiler_params=pltpu.CompilerParams(
            dimension_semantics=("parallel",),
            vmem_limit_bytes=_vmem_limit_bytes(tn, h, v),
        ),
        cost_estimate=pl.CostEstimate(
            flops=2 * n_pad * h * v,
            transcendentals=n_pad * v,
            bytes_accessed=n_pad * h * 2 + h * v * 2 + v * 4
                           + n_pad * 4 + n_pad * v * 4,
        ),
    )(x, w, b2d, mask2d)
    return out[:n]


# --------------------------- forward (full=False) ---------------------------
def sequential_lm_forward(hist, emb, w, b, *, vocab_size, sos, eos, oov,
                          block_n=256):
    """Reproduces SequentialLanguageModel.forward(hist, full=False)."""
    if hist.ndim < 2:
        raise RuntimeError("hist must be at least 2-D")

    # sos prepend
    if sos is not None:
        sos_row = jnp.full((1,) + hist.shape[1:], sos, dtype=hist.dtype)
        hist = jnp.concatenate([sos_row, hist], axis=0) if hist.shape[0] else sos_row

    # eos mask: token == eos at or before this step
    eos_mask = None
    if eos is not None:
        eos_mask = jnp.cumsum((hist == eos).astype(jnp.int32), axis=0) != 0

    # oov replacement (only applied when an oov token is configured)
    if oov is not None:
        oov_mask = (hist >= vocab_size) | (hist < 0)
        if eos_mask is not None:
            oov_mask = oov_mask & (~eos_mask)
        hist = jnp.where(oov_mask, jnp.asarray(oov, hist.dtype), hist)
    if eos_mask is not None:
        hist = jnp.where(eos_mask, jnp.asarray(eos, hist.dtype), hist)

    hist_shape = hist.shape
    first = hist_shape[0]
    rest = int(np.prod(hist_shape[1:]))
    hist_flat = hist.reshape(first, rest)

    # concrete calc_last_log_probs: embed last token, project, log-softmax.
    # bf16 parameters feed the MXU fast path; accumulation stays f32.
    # TODO(synk): fuse this gather into the kernel (scalar-prefetch row gather)
    # once a multi-row gather index_map is practical; left in XLA for now.
    emb_bf = emb.astype(jnp.bfloat16)
    w_bf = w.astype(jnp.bfloat16)
    last_tok = hist_flat[-1]                 # (rest,)
    x = emb_bf[last_tok]                     # (rest, H) gather (JAX glue)

    if eos_mask is not None:
        eos_last = eos_mask.reshape(first, rest)[-1]
    else:
        eos_last = jnp.zeros((rest,), dtype=jnp.int32)

    out = _last_log_probs_pallas(x, w_bf, b, eos_last, block_n=block_n)
    return out.reshape(tuple(hist_shape[1:]) + (vocab_size,))

    # TODO(synk): full=True path (per-step log-probs) would loop the same kernel
    # over history prefixes; only full=False (default forward) is kernelized.


# ------------------------------ pure-JAX reference ---------------------------
def _reference(hist, emb, w, b, *, vocab_size, sos, eos, oov):
    sos_row = jnp.full((1,) + hist.shape[1:], sos, dtype=hist.dtype)
    h = jnp.concatenate([sos_row, hist], axis=0)
    eos_mask = jnp.cumsum((h == eos).astype(jnp.int32), axis=0) != 0
    oov_mask = ((h >= vocab_size) | (h < 0)) & (~eos_mask)
    h = jnp.where(oov_mask, oov, h)
    h = jnp.where(eos_mask, eos, h)
    x = emb.astype(jnp.bfloat16)[h[-1].reshape(-1)]
    logits = jnp.dot(x, w.astype(jnp.bfloat16),
                     preferred_element_type=jnp.float32) + b
    logp = jax.nn.log_softmax(logits, axis=-1)
    keep = ~eos_mask[-1].reshape(-1, 1)
    out = jnp.where(keep, logp, 0.0)
    return out.reshape(tuple(hist.shape[1:]) + (vocab_size,))


# ----------------------------------- main ------------------------------------
if __name__ == "__main__":
    VOCAB = 128       # lane-friendly vocab size
    HIDDEN = 32
    S, B = 6, 16      # hist: (S, B); B=16 + block_n=8 exercises a 2-tile grid
    SOS = VOCAB       # out-of-vocab sos (allowed)
    EOS = 5           # in-vocab eos
    OOV = 1           # in-vocab oov token

    key = jax.random.PRNGKey(0)
    k_h, k_e, k_w, k_b = jax.random.split(key, 4)

    # history with some out-of-range values and some eos tokens
    hist = jax.random.randint(k_h, (S, B), minval=-2, maxval=VOCAB + 8,
                              dtype=jnp.int32)
    hist = hist.at[3, 0].set(EOS)   # ensure at least one finished sequence

    # deterministic synthetic parameters (VOCAB + 1 rows so sos is embeddable)
    emb = jax.random.normal(k_e, (VOCAB + 1, HIDDEN), jnp.float32) * 0.1
    w = jax.random.normal(k_w, (HIDDEN, VOCAB), jnp.float32) * 0.1
    b = jax.random.normal(k_b, (VOCAB,), jnp.float32) * 0.01

    out = sequential_lm_forward(hist, emb, w, b, vocab_size=VOCAB,
                                sos=SOS, eos=EOS, oov=OOV, block_n=8)
    out = jax.block_until_ready(out)

    ref = _reference(hist, emb, w, b, vocab_size=VOCAB,
                     sos=SOS, eos=EOS, oov=OOV)
    np.testing.assert_allclose(np.asarray(out), np.asarray(ref),
                               rtol=1e-4, atol=1e-4)
    assert out.shape == (B, VOCAB)

    print("KERNEL_OK")
</pallas_src>

<mosaic_0001>
module attributes {stable_mosaic.version = 11 : i64} {
  func.func @_lm_kernel(%arg0: i32, %arg1: memref<8x32xbf16, #tpu.memory_space<vmem>>, %arg2: memref<32x128xbf16, #tpu.memory_space<vmem>>, %arg3: memref<1x128xf32, #tpu.memory_space<vmem>>, %arg4: memref<8x1xi32, #tpu.memory_space<vmem>>, %arg5: memref<8x128xf32, #tpu.memory_space<vmem>>) attributes {dimension_semantics = [#tpu.dimension_semantics<parallel>], iteration_bounds = array<i64: 2>, scalar_prefetch = 0 : i64, scratch_operands = 0 : i64, tpu.core_type = #tpu.core_type<tc>, window_params = [{transform_indices = @transform_0, window_bounds = array<i64: 8, 32>}, {pipeline_mode = #tpu.pipeline_mode<synchronous>, transform_indices = @transform_1, window_bounds = array<i64: 32, 128>}, {pipeline_mode = #tpu.pipeline_mode<synchronous>, transform_indices = @transform_2, window_bounds = array<i64: 1, 128>}, {transform_indices = @transform_3, window_bounds = array<i64: 8, 1>}, {transform_indices = @transform_4, window_bounds = array<i64: 8, 128>}]} {
    %c0 = arith.constant 0 : index
    %c0_0 = arith.constant 0 : index
    %0 = vector.load %arg1[%c0, %c0_0] : memref<8x32xbf16, #tpu.memory_space<vmem>>, vector<8x32xbf16>
    %c0_1 = arith.constant 0 : index
    %c0_2 = arith.constant 0 : index
    %1 = vector.load %arg2[%c0_1, %c0_2] : memref<32x128xbf16, #tpu.memory_space<vmem>>, vector<32x128xbf16>
    %cst = arith.constant dense<0.000000e+00> : vector<8x128xf32>
    %2 = tpu.matmul %0, %1, %cst {dimension_numbers = #tpu.dot_dimension_numbers<[1], [0], [0], [1], [0, 0, 1, 1], [], []>} : vector<8x32xbf16>, vector<32x128xbf16>, vector<8x128xf32> -> vector<8x128xf32>
    %c0_3 = arith.constant 0 : index
    %c0_4 = arith.constant 0 : index
    %3 = vector.load %arg3[%c0_3, %c0_4] : memref<1x128xf32, #tpu.memory_space<vmem>>, vector<1x128xf32>
    %4 = vector.broadcast %3 : vector<1x128xf32> to vector<8x128xf32>
    %5 = arith.addf %2, %4 : vector<8x128xf32>
    %cst_5 = arith.constant dense<0xFF800000> : vector<8xf32>
    %6 = vector.multi_reduction <maximumf>, %5, %cst_5 [1] : vector<8x128xf32> to vector<8xf32>
    %7 = vector.shape_cast %6 : vector<8xf32> to vector<8x1xf32>
    %8 = vector.broadcast %7 : vector<8x1xf32> to vector<8x128xf32>
    %9 = arith.subf %5, %8 : vector<8x128xf32>
    %10 = math.exp %9 : vector<8x128xf32>
    %cst_6 = arith.constant dense<0.000000e+00> : vector<8xf32>
    %11 = vector.multi_reduction <add>, %10, %cst_6 [1] : vector<8x128xf32> to vector<8xf32>
    %12 = vector.shape_cast %11 : vector<8xf32> to vector<8x1xf32>
    %13 = math.log %12 : vector<8x1xf32>
    %14 = arith.addf %7, %13 : vector<8x1xf32>
    %15 = vector.broadcast %14 : vector<8x1xf32> to vector<8x128xf32>
    %16 = arith.subf %5, %15 : vector<8x128xf32>
    %c0_7 = arith.constant 0 : index
    %c0_8 = arith.constant 0 : index
    %17 = vector.load %arg4[%c0_7, %c0_8] : memref<8x1xi32, #tpu.memory_space<vmem>>, vector<8x1xi32>
    %c0_i32 = arith.constant 0 : i32
    %18 = vector.broadcast %c0_i32 : i32 to vector<8x1xi32>
    %19 = arith.cmpi eq, %17, %18 : vector<8x1xi32>
    %cst_9 = arith.constant 0.000000e+00 : f32
    %20 = vector.shape_cast %19 : vector<8x1xi1> to vector<8x1xi1>
    %21 = vector.broadcast %20 : vector<8x1xi1> to vector<8x128xi1>
    %22 = vector.broadcast %cst_9 : f32 to vector<8x128xf32>
    %23 = arith.select %21, %16, %22 : vector<8x128xi1>, vector<8x128xf32>
    %c0_10 = arith.constant 0 : index
    %c0_11 = arith.constant 0 : index
    %24 = vector.load %arg5[%c0_10, %c0_11] : memref<8x128xf32, #tpu.memory_space<vmem>>, vector<8x128xf32>
    tpu.vector_store %arg5[%c0_10, %c0_11], %23 {strides = array<i32>} : memref<8x128xf32, #tpu.memory_space<vmem>>, vector<8x128xf32>,
    return
  }
  func.func @transform_0(%arg0: i32) -> (i32, i32) {
    %c0_i32 = arith.constant 0 : i32
    %c0_i32_0 = arith.constant 0 : i32
    return %arg0, %c0_i32 : i32, i32
  }
  func.func @transform_1(%arg0: i32) -> (i32, i32) {
    %c0_i32 = arith.constant 0 : i32
    %c0_i32_0 = arith.constant 0 : i32
    %c0_i32_1 = arith.constant 0 : i32
    return %c0_i32, %c0_i32_0 : i32, i32
  }
  func.func @transform_2(%arg0: i32) -> (i32, i32) {
    %c0_i32 = arith.constant 0 : i32
    %c0_i32_0 = arith.constant 0 : i32
    %c0_i32_1 = arith.constant 0 : i32
    return %c0_i32, %c0_i32_0 : i32, i32
  }
  func.func @transform_3(%arg0: i32) -> (i32, i32) {
    %c0_i32 = arith.constant 0 : i32
    %c0_i32_0 = arith.constant 0 : i32
    return %arg0, %c0_i32 : i32, i32
  }
  func.func @transform_4(%arg0: i32) -> (i32, i32) {
    %c0_i32 = arith.constant 0 : i32
    %c0_i32_0 = arith.constant 0 : i32
    return %arg0, %c0_i32 : i32, i32
  }
}

</mosaic_0001>

<llo_original>
// kernel: tpu_custom_call.1
$region0: #{tpu_custom_call.1}
  #allocation0 [shape = 'u32[]', space=smem, size = 0x4, offset = 0x4, fixed_abs, tag = 'smem constant byte address 0x4 - core index']
  #allocation1 [shape = 'u32[144,128]{1,0:T(1,128)}', space=vmem, size = 0x12000, scoped, tag = 'internal scratch']
  %s0 = inlined_call_operand.hbm [shape: bf16[16,32], index: 0, kind: input, shape index: {}]
  %s1 = inlined_call_operand.vmem [shape: bf16[32,128], index: 1, kind: input, shape index: {}]
  %s2 = inlined_call_operand.vmem [shape: f32[1,128], index: 2, kind: input, shape index: {}]
  %s3 = inlined_call_operand.vmem [shape: s32[16,1], index: 3, kind: input, shape index: {}]
  %s4 = inlined_call_operand.hbm [shape: f32[16,128], index: 4, kind: output, shape index: {}]
  %s5 = sld [smem:[#allocation0]]
  $region53: #{tpu_custom_call.1} parent=0
    _
  %s7 = ssub.s32 1, %s5
  %s8 = scalar_select 0, %s7, %s5
  $region1: #{tpu_custom_call.1} parent=0
    #allocation2 [shape = 'u8[4096]{0}', space=vmem, size = 0x1000, scoped, tag = 'input window, operand 0']
    #allocation3 [shape = 's32[2]{0}', space=sflag, size = 0x8, scoped, tag = 'scoped memory for tpu_custom_call.1']
    #allocation4 [shape = 's32[2]{0}', space=sflag, size = 0x8, scoped, tag = 'scoped memory for tpu_custom_call.1']
    #allocation5 [shape = 'u8[8192]{0}', space=vmem, size = 0x2000, scoped, tag = 'output window, operand 0']
    %9 = vsyncpa [#allocation3], 0
    %s10 = scalar_lea.sflag [#allocation3], 1
    %11 = vsyncpa %s10, 0
    %12 = vsyncpa [#allocation4], 0
    %s13 = scalar_lea.sflag [#allocation4], 1
    %14 = vsyncpa %s13, 0
    loop: start=0, step=1, limit=4
    $region2: #{tpu_custom_call.1} parent=1 // loop_pre_header
      _
    $region3: #{tpu_custom_call.1} parent=1 // loop_header
      %s16 = sphi 0, %s20
      %p17 = scmp.ge.s32.totalorder %s16, 4
      %s26 = sphi 0, %s28
      %s29 = sphi 0, %s26
      %s30 = sphi 0, %s29
      %s46 = sphi 0, %s30
      %s50 = sphi 0, %s50
      %s52 = sphi 0, %s50
      %s53 = sphi 0, %s52
      %s67 = sphi 0, %s53
      %s71 = sphi 0, %s71
      %s73 = sphi 0, %s71
      %s74 = sphi 0, %s73
      %s88 = sphi 0, %s74
      %s94 = sphi 0, %s96
      %s97 = sphi 0, %s94
      %s98 = sphi 0, %s97
      %s114 = sphi 0, %s98
      %s120 = sphi 0, %s122
      %s123 = sphi 0, %s120
      %s124 = sphi 0, %s123
      %s140 = sphi 0, %s124
    $region4: #{tpu_custom_call.1} parent=1 // loop_header_branch
      %19 = sbr.rel (%p17) target = $region8
    $region5: #{tpu_custom_call.1} parent=1 // loop_body
      %s21 = ssub.s32 %s16, 1
      %s22 = ssub.s32 %s16, 2
      %s23 = sadd.s32 %s16, 1
      %s24 = ssub.s32 %s16, %s23
      %p25 = scmp.eq.s32.totalorder %s24, 0
      %s27 = sadd.s32 %s26, 1
      %s28 = scalar_select %p25, %s26, %s27
      %p31 = pneg %p25
      %p32 = scmp.eq.s32.totalorder %s16, 1
      %p33 = por %p31, %p32
      %p34 = scmp.ne.s32.totalorder %s26, %s29
      %p35 = scmp.eq.s32.totalorder %s16, 0
      %p36 = por %p34, %p35
      %p37 = scmp.ne.s32.totalorder %s26, %s29
      %p38 = scmp.eq.s32.totalorder %s21, 1
      %p39 = por %p37, %p38
      %p40 = scmp.ne.s32.totalorder %s29, %s30
      %p41 = scmp.eq.s32.totalorder %s21, 0
      %p42 = por %p40, %p41
      %p43 = scmp.ne.s32.totalorder %s29, %s30
      %p44 = scmp.eq.s32.totalorder %s22, 1
      %p45 = por %p43, %p44
      %p47 = scmp.ne.s32.totalorder %s30, %s46
      %p48 = scmp.eq.s32.totalorder %s22, 0
      %p49 = por %p47, %p48
      %s51 = sadd.s32 %s50, 1
      %p54 = scmp.eq.s32.totalorder %s16, 1
      %p55 = scmp.ne.s32.totalorder %s50, %s52
      %p56 = scmp.eq.s32.totalorder %s16, 0
      %p57 = por %p55, %p56
      %p58 = scmp.ne.s32.totalorder %s50, %s52
      %p59 = scmp.eq.s32.totalorder %s21, 1
      %p60 = por %p58, %p59
      %p61 = scmp.ne.s32.totalorder %s52, %s53
      %p62 = scmp.eq.s32.totalorder %s21, 0
      %p63 = por %p61, %p62
      %p64 = scmp.ne.s32.totalorder %s52, %s53
      %p65 = scmp.eq.s32.totalorder %s22, 1
      %p66 = por %p64, %p65
      %p68 = scmp.ne.s32.totalorder %s53, %s67
      %p69 = scmp.eq.s32.totalorder %s22, 0
      %p70 = por %p68, %p69
      %s72 = sadd.s32 %s71, 1
      %p75 = scmp.eq.s32.totalorder %s16, 1
      %p76 = scmp.ne.s32.totalorder %s71, %s73
      %p77 = scmp.eq.s32.totalorder %s16, 0
      %p78 = por %p76, %p77
      %p79 = scmp.ne.s32.totalorder %s71, %s73
      %p80 = scmp.eq.s32.totalorder %s21, 1
      %p81 = por %p79, %p80
      %p82 = scmp.ne.s32.totalorder %s73, %s74
      %p83 = scmp.eq.s32.totalorder %s21, 0
      %p84 = por %p82, %p83
      %p85 = scmp.ne.s32.totalorder %s73, %s74
      %p86 = scmp.eq.s32.totalorder %s22, 1
      %p87 = por %p85, %p86
      %p89 = scmp.ne.s32.totalorder %s74, %s88
      %p90 = scmp.eq.s32.totalorder %s22, 0
      %p91 = por %p89, %p90
      %s92 = ssub.s32 %s16, %s23
      %p93 = scmp.eq.s32.totalorder %s92, 0
      %s95 = sadd.s32 %s94, 1
      %s96 = scalar_select %p93, %s94, %s95
      %p99 = pneg %p93
      %p100 = scmp.eq.s32.totalorder %s16, 1
      %p101 = por %p99, %p100
      %p102 = scmp.ne.s32.totalorder %s94, %s97
      %p103 = scmp.eq.s32.totalorder %s16, 0
      %p104 = por %p102, %p103
      %p105 = scmp.ne.s32.totalorder %s94, %s97
      %p106 = scmp.eq.s32.totalorder %s21, 1
      %p107 = por %p105, %p106
      %p108 = scmp.ne.s32.totalorder %s97, %s98
      %p109 = scmp.eq.s32.totalorder %s21, 0
      %p110 = por %p108, %p109
      %p111 = scmp.ne.s32.totalorder %s97, %s98
      %p112 = scmp.eq.s32.totalorder %s22, 1
      %p113 = por %p111, %p112
      %p115 = scmp.ne.s32.totalorder %s98, %s114
      %p116 = scmp.eq.s32.totalorder %s22, 0
      %p117 = por %p115, %p116
      %s118 = ssub.s32 %s16, %s23
      %p119 = scmp.eq.s32.totalorder %s118, 0
      %s121 = sadd.s32 %s120, 1
      %s122 = scalar_select %p119, %s120, %s121
      %p125 = pneg %p119
      %p126 = scmp.eq.s32.totalorder %s16, 1
      %p127 = por %p125, %p126
      %p128 = scmp.ne.s32.totalorder %s120, %s123
      %p129 = scmp.eq.s32.totalorder %s16, 0
      %p130 = por %p128, %p129
      %p131 = scmp.ne.s32.totalorder %s120, %s123
      %p132 = scmp.eq.s32.totalorder %s21, 1
      %p133 = por %p131, %p132
      %p134 = scmp.ne.s32.totalorder %s123, %s124
      %p135 = scmp.eq.s32.totalorder %s21, 0
      %p136 = por %p134, %p135
      %p137 = scmp.ne.s32.totalorder %s123, %s124
      %p138 = scmp.eq.s32.totalorder %s22, 1
      %p139 = por %p137, %p138
      %p141 = scmp.ne.s32.totalorder %s124, %s140
      %p142 = scmp.eq.s32.totalorder %s22, 0
      %p143 = por %p141, %p142
      %p144 = scmp.le.s32.totalorder 1, %s16
      %p145 = scmp.lt.s32.totalorder %s16, 3
      %p146 = pnand %p144, %p145
      %p147 = pneg %p146
      // Predicated region
      $region9: #{tpu_custom_call.1} parent=5 // pred_check
        _
      $region10: #{tpu_custom_call.1} parent=5 // pred_check_branch
        %149 = sbr.rel (%p146) target = $region12
      $region11: #{tpu_custom_call.1} parent=5 // pred_region
        %s150 = ssub.s32 %s16, 1
        // Predicated region
        $region13: #{tpu_custom_call.1} parent=11 // pred_check
          %p151 = pneg %p63
        $region14: #{tpu_custom_call.1} parent=11 // pred_check_branch
          %153 = sbr.rel (%p151) target = $region16
        $region15: #{tpu_custom_call.1} parent=11 // pred_region
          _
        $region16: #{tpu_custom_call.1} parent=11 // pred_fallthru
          _
        // Predicated region
        $region17: #{tpu_custom_call.1} parent=11 // pred_check
          %p154 = pneg %p84
        $region18: #{tpu_custom_call.1} parent=11 // pred_check_branch
          %156 = sbr.rel (%p154) target = $region20
        $region19: #{tpu_custom_call.1} parent=11 // pred_region
          _
        $region20: #{tpu_custom_call.1} parent=11 // pred_fallthru
          _
      $region12: #{tpu_custom_call.1} parent=5 // pred_fallthru
        _
      %p157 = scmp.lt.s32.totalorder %s16, 2
      // Predicated region
      $region21: #{tpu_custom_call.1} parent=5 // pred_check
        %p158 = pneg %p157
      $region22: #{tpu_custom_call.1} parent=5 // pred_check_branch
        %160 = sbr.rel (%p158) target = $region24
      $region23: #{tpu_custom_call.1} parent=5 // pred_region
        // Predicated region
        $region25: #{tpu_custom_call.1} parent=23 // pred_check
          %p161 = pneg %p36
        $region26: #{tpu_custom_call.1} parent=23 // pred_check_branch
          %163 = sbr.rel (%p161) target = $region28
        $region27: #{tpu_custom_call.1} parent=23 // pred_region
          %s164 = sand.u32 %s26, 1
          %s165 = scalar_lea.sflag [#allocation3], %s164
          %s166 = sand.u32 %s26, 1
          %s167 = smul.addr %s166, 4
          %s168 = scalar_lea.vmem [#allocation2], %s167
          %s170 = ssub.s32 64, 64
          %171 = vsyncadd %s165, %s170
          %s172 = smul.addr %s16, 64
          %s173 = scalar_lea.hbm %s0, %s172
          %s175 = sshll.u32 %s168, 4
          %s176 = int_to_ptr.vmem [resolvable:$true] %s175
          %178 = dma.hbm_to_vmem [thread:$0]  %s173, 64, %s176, %s165
        $region28: #{tpu_custom_call.1} parent=23 // pred_fallthru
          _
        // Predicated region
        $region29: #{tpu_custom_call.1} parent=23 // pred_check
          %p179 = pneg %p104
        $region30: #{tpu_custom_call.1} parent=23 // pred_check_branch
          %181 = sbr.rel (%p179) target = $region32
        $region31: #{tpu_custom_call.1} parent=23 // pred_region
          %p182 = scmp.lt.s32.totalorder %s16, 1
          %s183 = scalar_select %p182, %s16, 1
          %s184 = smul.addr %s183, 8
          %s185 = scalar_lea.vmem %s3, %s184
        $region32: #{tpu_custom_call.1} parent=23 // pred_fallthru
          _
      $region24: #{tpu_custom_call.1} parent=5 // pred_fallthru
        _
      %p186 = scmp.le.s32.totalorder 1, %s16
      %p187 = scmp.lt.s32.totalorder %s16, 3
      %p188 = pnand %p186, %p187
      %p189 = pneg %p188
      // Predicated region
      $region33: #{tpu_custom_call.1} parent=5 // pred_check
        _
      $region34: #{tpu_custom_call.1} parent=5 // pred_check_branch
        %191 = sbr.rel (%p188) target = $region36
      $region35: #{tpu_custom_call.1} parent=5 // pred_region
        %s192 = ssub.s32 %s16, 1
        %s193 = sand.u32 %s29, 1
        %s194 = scalar_lea.sflag [#allocation3], %s193
        %s195 = sand.u32 %s29, 1
        %s196 = smul.addr %s195, 4
        %s197 = scalar_lea.vmem [#allocation2], %s196
        // Predicated region
        $region37: #{tpu_custom_call.1} parent=35 // pred_check
          %p198 = pneg %p42
        $region38: #{tpu_custom_call.1} parent=35 // pred_check_branch
          %200 = sbr.rel (%p198) target = $region40
        $region39: #{tpu_custom_call.1} parent=35 // pred_region
          %201 = dma.done %s194, 64
        $region40: #{tpu_custom_call.1} parent=35 // pred_fallthru
          _
        %s202 = sand.u32 %s29, 1
        %s203 = scalar_lea.sflag [#allocation3], %s202
        %s204 = sand.u32 %s29, 1
        %s205 = smul.addr %s204, 4
        %s206 = scalar_lea.vmem [#allocation2], %s205
        %p207 = pneg %p42
        %p208 = pneg %p39
        %p209 = pneg %p63
        %p210 = pneg %p60
        %p211 = pneg %p84
        %p212 = pneg %p81
        %p213 = scmp.lt.s32.totalorder %s21, 1
        %s214 = scalar_select %p213, %s21, 1
        %s215 = smul.addr %s214, 8
        %s216 = scalar_lea.vmem %s3, %s215
        %p217 = pneg %p110
        %p218 = pneg %p107
        %p219 = pneg %p136
        %p220 = pneg %p133
        %s221 = sand.u32 %s123, 1
        %s222 = scalar_lea.sflag [#allocation4], %s221
        %s223 = sand.u32 %s123, 1
        %s224 = smul.addr %s223, 8
        %s225 = scalar_lea.vmem [#allocation5], %s224
        %p226 = scmp.lt.s32.totalorder %s21, 1
        %s227 = scalar_select %p226, %s21, 1
        %s228 = smul.addr %s227, 8
        %s229 = scalar_lea.vmem %s3, %s228
        %v231 = vld [vmem:[%s197] sm:$0xf]
        %v232 = vld [vmem:[%s1] sm:$0xf]
        %v233 = vld [vmem:[%s1 + $0x4] sm:$0xf]
        %v234 = vld [vmem:[%s1 + $0x8] sm:$0xf]
        %v235 = vld [vmem:[%s1 + $0xc] sm:$0xf]
        %v236 = vld [vmem:[%s2] sm:$0x1]
        %v238 = vlaneseq
        %v239 = vshrl.u32 %v238, 7
        %v240 = vsub.s32 0, %v239
        %v241 = vrot.slane %v236, %v240
        %v247 = vunpack.c.l.b16 %v232
        %v248 = vunpack.c.l.b16 %v233
        %v249 = vunpack.c.l.b16 %v234
        %v250 = vunpack.c.l.b16 %v235
        %v251 = vpack.c.b16 %v248, %v247
        %v252 = vpack.c.b16 %v250, %v249
        %vm255 = vcmask 261120
        %v257 = vsel %vm255, %v231, 0
        %259 = vmatprep.subr.bf16.mxu0 0
        %260 = vmatpush1.bf16.msra.mxu0 0
        %261 = vmatprep.subr.bf16.mxu0 0
        %262 = vmatpush1.bf16.msra.mxu0 0
        %263 = vmatprep.subr.bf16.mxu0 0
        %264 = vmatpush1.bf16.msra.mxu0 0
        %265 = vmatprep.subr.bf16.mxu0 0
        %266 = vmatpush1.bf16.msra.mxu0 0
        %267 = vmatprep.subr.bf16.mxu0 0
        %268 = vmatpush1.bf16.msra.mxu0 0
        %269 = vmatprep.subr.bf16.mxu0 0
        %270 = vmatpush1.bf16.msra.mxu0 0
        %271 = vmatprep.subr.bf16.mxu0 0
        %272 = vmatpush1.bf16.msra.mxu0 %v252
        %273 = vmatprep.subr.bf16.mxu0 0
        %274 = vmatpush1.bf16.msra.mxu0 %v251
        %275 = vmatprep.subr.bf16.mxu0 0
        %276 = vmatpush2.bf16.msra.mxu0 0
        %277 = vmatprep.subr.bf16.mxu0 0
        %278 = vmatpush2.bf16.msra.mxu0 0
        %279 = vmatprep.subr.bf16.mxu0 0
        %280 = vmatpush2.bf16.msra.mxu0 0
        %281 = vmatprep.subr.bf16.mxu0 0
        %282 = vmatpush2.bf16.msra.mxu0 0
        %283 = vmatprep.subr.bf16.mxu0 0
        %284 = vmatpush2.bf16.msra.mxu0 0
        %285 = vmatprep.subr.bf16.mxu0 0
        %286 = vmatpush2.bf16.msra.mxu0 0
        %287 = vmatprep.subr.bf16.mxu0 0
        %288 = vmatpush2.bf16.msra.mxu0 0
        %289 = vmatprep.subr.bf16.mxu0 0
        %290 = vmatpush2.bf16.msra.mxu0 0
        %291 = vmatprep.mubr.bf16.mxu0 0
        %292 = vmatmul.mubr.bf16.gmra.mxu0 %v257
        %v293 = vpop.f32.mrf.mxu0
        %v294 = vadd.f32 %v241, %v293
        %v295 = vpop.f32.mrf.mxu0
        %v296 = vpop.f32.mrf.mxu0
        %v297 = vpop.f32.mrf.mxu0
        %298 = vdwg.mxu0
        %299 = vmax.xlane.f32.xlu0 %v294
        %v300 = vpop.xlane.xlu0 %299
        %v301 = vsub.f32 %v294, %v300
        %v302 = vmul.f32 %v301, 1.442695
        %v303 = vpow.pop %v302
        %304 = vadd.xlane.f32.xlu0 %v303
        %v305 = vpop.xlane.xlu0 %304
        %v306 = vlog2.pop %v305
        %v307 = vmul.f32 %v306, 0.6931472
        %v308 = vadd.f32 %v300, %v307
        %v309 = vsub.f32 %v294, %v308
        %v310 = vld [vmem:[%s229] sm:$0xff]
        %vm311 = vcmp.eq.s32.totalorder %v310, 0
        %v312 = vsel %vm311, 1, 0
        %313 = vset.pattern.permute.xlu0 0
        %314 = vperm.xlu0 %313, %v312
        %v315 = vpop.permute.xlu0 %314
        %vm316 = vcmp.eq.s32.totalorder %v315, 1
        %v317 = vsel %vm316, %v309, 0.0
        %318 = vst [vmem:[%s225] sm:$0xff] %v317
        %s319 = sand.u32 %s123, 1
        %s320 = scalar_lea.sflag [#allocation4], %s319
        %s321 = sand.u32 %s123, 1
        %s322 = smul.addr %s321, 8
        %s323 = scalar_lea.vmem [#allocation5], %s322
        // Predicated region
        $region41: #{tpu_custom_call.1} parent=35 // pred_check
          %p324 = pneg %p133
        $region42: #{tpu_custom_call.1} parent=35 // pred_check_branch
          %326 = sbr.rel (%p324) target = $region44
        $region43: #{tpu_custom_call.1} parent=35 // pred_region
          %s328 = ssub.s32 128, 128
          %329 = vsyncadd %s320, %s328
          %s330 = smul.addr %s21, 128
          %s331 = scalar_lea.hbm %s4, %s330
          %s333 = sshll.u32 %s323, 4
          %s334 = int_to_ptr.vmem [resolvable:$true] %s333
          %336 = dma.vmem_to_hbm [thread:$0]  %s334, 128, %s331, %s320
        $region44: #{tpu_custom_call.1} parent=35 // pred_fallthru
          _
      $region36: #{tpu_custom_call.1} parent=5 // pred_fallthru
        _
      %p337 = scmp.le.s32.totalorder 2, %s16
      // Predicated region
      $region45: #{tpu_custom_call.1} parent=5 // pred_check
        %p338 = pneg %p337
      $region46: #{tpu_custom_call.1} parent=5 // pred_check_branch
        %340 = sbr.rel (%p338) target = $region48
      $region47: #{tpu_custom_call.1} parent=5 // pred_region
        %s341 = ssub.s32 %s16, 2
        // Predicated region
        $region49: #{tpu_custom_call.1} parent=47 // pred_check
          %p342 = pneg %p139
        $region50: #{tpu_custom_call.1} parent=47 // pred_check_branch
          %344 = sbr.rel (%p342) target = $region52
        $region51: #{tpu_custom_call.1} parent=47 // pred_region
          %s345 = sand.u32 %s124, 1
          %s346 = scalar_lea.sflag [#allocation4], %s345
          %s347 = sand.u32 %s124, 1
          %s348 = smul.addr %s347, 8
          %s349 = scalar_lea.vmem [#allocation5], %s348
          %350 = dma.done %s346, 128
        $region52: #{tpu_custom_call.1} parent=47 // pred_fallthru
          _
      $region48: #{tpu_custom_call.1} parent=5 // pred_fallthru
        _
    $region6: #{tpu_custom_call.1} parent=1 // loop_footer
      %s20 = sadd.s32 1, %s16
    $region7: #{tpu_custom_call.1} parent=1 // loop_footer_branch
      %15 = sbr.rel target = $region3
    $region8: #{tpu_custom_call.1} parent=1 // loop_exit
      _
    %351 = vsyncpa [#allocation3], 1
    %s352 = scalar_lea.sflag [#allocation3], 1
    %353 = vsyncpa %s352, 1
    %354 = vsyncpa [#allocation4], 1
    %s355 = scalar_lea.sflag [#allocation4], 1
    %356 = vsyncpa %s355, 1

</llo_original>
